<compile_context>
chip_gen: v5e
topology: v5e:2x2
jax: 0.10.0
libtpu: 0.0.40
codegen_flags: <defaults>
</compile_context>

<pallas_src>
import functools

import jax
import jax.numpy as jnp
import numpy as np
from jax.experimental import pallas as pl
from jax.experimental.pallas import tpu as pltpu

LANE = 128


def _round_up(x: int, m: int) -> int:
    return ((x + m - 1) // m) * m


# ----------------------------------------------------------------------------
# Pallas kernel: whole MLP for one batch tile.
#   refs = (x, w_in, b_in, [w_h, b_h] * num_hidden, w_out, b_out, out)
#   weights bf16 (MXU operands), biases f32, accumulation / elementwise f32.
#   out block is (output_dim, tile_m): the head is transposed in-kernel so
#   only the real output rows (lane-dense over the batch tile) hit HBM.
# ----------------------------------------------------------------------------
def mlp_kernel(num_hidden, output_dim, *refs):
    x_ref = refs[0]
    w_in_ref, b_in_ref = refs[1], refs[2]
    hidden_refs = refs[3:3 + 2 * num_hidden]
    w_out_ref = refs[3 + 2 * num_hidden]
    b_out_ref = refs[4 + 2 * num_hidden]
    out_ref = refs[5 + 2 * num_hidden]

    f32 = jnp.float32

    # input layer: bf16 operands -> f32 MXU accumulator; bias + ReLU on f32
    h = jnp.dot(x_ref[...], w_in_ref[...], preferred_element_type=f32)
    h = jax.nn.relu(h + b_in_ref[...])

    # hidden layers (unrolled at trace time; weights are VMEM-resident)
    for layer in range(num_hidden):
        w = hidden_refs[2 * layer][...]
        b = hidden_refs[2 * layer + 1][...]
        h = jnp.dot(h.astype(w.dtype), w, preferred_element_type=f32)
        h = jax.nn.relu(h + b)

    # head: lane-padded matmul, then XLU transpose so only `output_dim`
    # lane-dense rows of shape [output_dim, tile_m] are written back.
    head = jnp.dot(h.astype(w_out_ref.dtype), w_out_ref[...],
                   preferred_element_type=f32) + b_out_ref[...]
    out_ref[...] = head.T[:output_dim, :]


# ----------------------------------------------------------------------------
# Wrapper: batch-tiled grid, resident weights, lane-dense narrow output.
#   params = [(W, b), ...] with natural (unpadded) shapes:
#     W: (d_prev, d_next), b: (1, d_next); last pair is the output head.
# ----------------------------------------------------------------------------
def mlp_forward_pallas(x, params, *, tile_m=None):
    batch, d_in = x.shape
    num_hidden = len(params) - 2
    w_in, b_in = params[0]
    w_out, b_out = params[-1]
    hidden = w_in.shape[1]
    output_dim = w_out.shape[1]

    # --- batch tiling: fill the MXU M dimension, cap to avoid vreg spills ---
    if tile_m is None:
        tile_m = min(256, max(8, int(pl.next_power_of_2(batch))))
    batch_pad = _round_up(batch, tile_m)
    grid = (batch_pad // tile_m,)

    # --- lane-dense streamed input: pad d_in (x cols and W_in rows) to 128 --
    d_in_pad = _round_up(d_in, LANE)
    if d_in_pad != d_in:
        x = jnp.pad(x, ((0, 0), (0, d_in_pad - d_in)))
        w_in = jnp.pad(w_in, ((0, d_in_pad - d_in), (0, 0)))
    if batch_pad != batch:
        x = jnp.pad(x, ((0, batch_pad - batch), (0, 0)))

    # --- lane-padded head weight (well-formed MXU pass; zero extra columns) -
    out_pad = _round_up(output_dim, LANE)
    if out_pad != output_dim:
        w_out = jnp.pad(w_out, ((0, 0), (0, out_pad - output_dim)))
        b_out = jnp.pad(b_out, ((0, 0), (0, out_pad - output_dim)))

    padded_params = [(w_in, b_in)] + list(params[1:-1]) + [(w_out, b_out)]
    flat_params = [t for wb in padded_params for t in wb]

    # --- cost estimate: helps XLA schedule around the custom call -----------
    flops = 2 * batch_pad * (d_in_pad * hidden
                             + num_hidden * hidden * hidden
                             + hidden * out_pad)
    bytes_accessed = int(x.size) * x.dtype.itemsize
    bytes_accessed += sum(int(t.size) * t.dtype.itemsize for t in flat_params)
    bytes_accessed += output_dim * batch_pad * 4
    cost = pl.CostEstimate(flops=int(flops), transcendentals=0,
                           bytes_accessed=int(bytes_accessed))

    def const_map(i):            # weights / biases: same block every grid step
        return (0, 0)

    def build(weight_pipeline_mode):
        in_specs = [pl.BlockSpec((tile_m, d_in_pad), lambda i: (i, 0))]
        for w, b in padded_params:
            in_specs.append(pl.BlockSpec(w.shape, index_map=const_map,
                                         pipeline_mode=weight_pipeline_mode))
            in_specs.append(pl.BlockSpec(b.shape, index_map=const_map,
                                         pipeline_mode=weight_pipeline_mode))
        return pl.pallas_call(
            functools.partial(mlp_kernel, num_hidden, output_dim),
            out_shape=jax.ShapeDtypeStruct((output_dim, batch_pad), jnp.float32),
            grid_spec=pl.GridSpec(
                grid=grid,
                in_specs=in_specs,
                out_specs=pl.BlockSpec((output_dim, tile_m), lambda i: (0, i)),
            ),
            compiler_params=pltpu.CompilerParams(
                dimension_semantics=("parallel",),   # shards grid on v7x 2 TCs
                vmem_limit_bytes=32 << 20,
            ),
            cost_estimate=cost,
        )

    try:
        # Constant-index resident params: single-buffer them so they don't
        # cost 2x VMEM (relevant when hidden/num_layers scale up on v7x).
        out = build(pl.Buffered(1))(x, *flat_params)
    except Exception:
        # Fallback for jax versions without Buffered(1) lowering support.
        out = build(None)(x, *flat_params)

    return out[:, :batch].T      # (batch, output_dim) f32


# ----------------------------------------------------------------------------
# References.
# ----------------------------------------------------------------------------
def mlp_forward_ref(x, params):
    """Same math / precision as the kernel (bf16 operands, f32 accumulate)."""
    h = x
    n = len(params)
    for idx, (w, b) in enumerate(params):
        h = jnp.dot(h.astype(w.dtype), w,
                    preferred_element_type=jnp.float32) + b
        if idx < n - 1:
            h = jax.nn.relu(h)
    return h


def mlp_forward_ref_f32(x, params):
    """Full-f32 reference matching the PyTorch module's numerics."""
    h = x.astype(jnp.float32)
    n = len(params)
    for idx, (w, b) in enumerate(params):
        h = jnp.dot(h, w.astype(jnp.float32)) + b.astype(jnp.float32)
        if idx < n - 1:
            h = jax.nn.relu(h)
    return h


# ----------------------------------------------------------------------------
# Main: deterministic small example (batch=64, in=32, hidden=128, out=1).
# ----------------------------------------------------------------------------
if __name__ == "__main__":
    BATCH = 64
    IN_DIM = 32
    HIDDEN = 128          # lane-aligned hidden width
    NUM_LAYERS = 2        # MLP default layer structure
    OUT_DIM = 1

    key = jax.random.PRNGKey(0)
    keys = jax.random.split(key, 2 * (NUM_LAYERS + 1) + 1)

    x_f32 = jax.random.normal(keys[0], (BATCH, IN_DIM), jnp.float32)

    def init_linear(kw, kb, d_in, d_out, scale=0.1):
        w = scale * jax.random.normal(kw, (d_in, d_out), jnp.float32)
        b = scale * jax.random.normal(kb, (1, d_out), jnp.float32)
        return w, b

    params_f32 = [init_linear(keys[1], keys[2], IN_DIM, HIDDEN)]   # LazyLinear
    k = 3
    for _ in range(NUM_LAYERS - 1):                                # hidden
        params_f32.append(init_linear(keys[k], keys[k + 1], HIDDEN, HIDDEN))
        k += 2
    params_f32.append(init_linear(keys[k], keys[k + 1], HIDDEN, OUT_DIM))  # head

    # bf16 matmul operands, f32 biases (accumulate & elementwise stay f32)
    params = [(w.astype(jnp.bfloat16), b) for (w, b) in params_f32]
    x = x_f32.astype(jnp.bfloat16)

    # --- run kernel (batch=64 -> tile_m=64, grid=(1,)) -----------------------
    y = mlp_forward_pallas(x, params)
    y = jax.block_until_ready(y)
    assert y.shape == (BATCH, OUT_DIM)

    # matched-precision reference: proves the kernel math is right
    y_ref = mlp_forward_ref(x, params)
    np.testing.assert_allclose(np.asarray(y), np.asarray(y_ref),
                               rtol=1e-2, atol=1e-2)

    # full-f32 reference == the PyTorch module's numerics (bf16 operand
    # rounding is the only deviation from the original nn.Module)
    y_f32 = mlp_forward_ref_f32(x_f32, params_f32)
    np.testing.assert_allclose(np.asarray(y), np.asarray(y_f32),
                               rtol=2e-2, atol=2e-2)

    # TODO(synk): MLP.predict/step (loss functions, DataLoader, device moves)
    # are training-loop glue, not forward-pass compute, and are not kernelized.
    print("KERNEL_OK")
</pallas_src>

<mosaic_0001>
module attributes {stable_mosaic.version = 11 : i64} {
  func.func @mlp_kernel(%arg0: i32, %arg1: memref<64x128xbf16, #tpu.memory_space<vmem>>, %arg2: memref<128x128xbf16, #tpu.memory_space<vmem>>, %arg3: memref<1x128xf32, #tpu.memory_space<vmem>>, %arg4: memref<128x128xbf16, #tpu.memory_space<vmem>>, %arg5: memref<1x128xf32, #tpu.memory_space<vmem>>, %arg6: memref<128x128xbf16, #tpu.memory_space<vmem>>, %arg7: memref<1x128xf32, #tpu.memory_space<vmem>>, %arg8: memref<1x64xf32, #tpu.memory_space<vmem>>) attributes {dimension_semantics = [#tpu.dimension_semantics<parallel>], iteration_bounds = array<i64: 1>, scalar_prefetch = 0 : i64, scratch_operands = 0 : i64, tpu.core_type = #tpu.core_type<tc>, window_params = [{transform_indices = @transform_0, window_bounds = array<i64: 64, 128>}, {pipeline_mode = #tpu.pipeline_mode<synchronous>, transform_indices = @transform_1, window_bounds = array<i64: 128, 128>}, {pipeline_mode = #tpu.pipeline_mode<synchronous>, transform_indices = @transform_2, window_bounds = array<i64: 1, 128>}, {pipeline_mode = #tpu.pipeline_mode<synchronous>, transform_indices = @transform_3, window_bounds = array<i64: 128, 128>}, {pipeline_mode = #tpu.pipeline_mode<synchronous>, transform_indices = @transform_4, window_bounds = array<i64: 1, 128>}, {pipeline_mode = #tpu.pipeline_mode<synchronous>, transform_indices = @transform_5, window_bounds = array<i64: 128, 128>}, {pipeline_mode = #tpu.pipeline_mode<synchronous>, transform_indices = @transform_6, window_bounds = array<i64: 1, 128>}, {transform_indices = @transform_7, window_bounds = array<i64: 1, 64>}]} {
    %c0 = arith.constant 0 : index
    %c0_0 = arith.constant 0 : index
    %0 = vector.load %arg1[%c0, %c0_0] : memref<64x128xbf16, #tpu.memory_space<vmem>>, vector<64x128xbf16>
    %c0_1 = arith.constant 0 : index
    %c0_2 = arith.constant 0 : index
    %1 = vector.load %arg2[%c0_1, %c0_2] : memref<128x128xbf16, #tpu.memory_space<vmem>>, vector<128x128xbf16>
    %cst = arith.constant dense<0.000000e+00> : vector<64x128xf32>
    %2 = tpu.matmul %0, %1, %cst {dimension_numbers = #tpu.dot_dimension_numbers<[1], [0], [0], [1], [0, 0, 1, 1], [], []>} : vector<64x128xbf16>, vector<128x128xbf16>, vector<64x128xf32> -> vector<64x128xf32>
    %c0_3 = arith.constant 0 : index
    %c0_4 = arith.constant 0 : index
    %3 = vector.load %arg3[%c0_3, %c0_4] : memref<1x128xf32, #tpu.memory_space<vmem>>, vector<1x128xf32>
    %4 = vector.broadcast %3 : vector<1x128xf32> to vector<64x128xf32>
    %5 = arith.addf %2, %4 : vector<64x128xf32>
    %cst_5 = arith.constant 0.000000e+00 : f32
    %6 = vector.broadcast %cst_5 : f32 to vector<64x128xf32>
    %7 = arith.maximumf %5, %6 : vector<64x128xf32>
    %c0_6 = arith.constant 0 : index
    %c0_7 = arith.constant 0 : index
    %8 = vector.load %arg4[%c0_6, %c0_7] : memref<128x128xbf16, #tpu.memory_space<vmem>>, vector<128x128xbf16>
    %c0_8 = arith.constant 0 : index
    %c0_9 = arith.constant 0 : index
    %9 = vector.load %arg5[%c0_8, %c0_9] : memref<1x128xf32, #tpu.memory_space<vmem>>, vector<1x128xf32>
    %10 = arith.truncf %7 : vector<64x128xf32> to vector<64x128xbf16>
    %cst_10 = arith.constant dense<0.000000e+00> : vector<64x128xf32>
    %11 = tpu.matmul %10, %8, %cst_10 {dimension_numbers = #tpu.dot_dimension_numbers<[1], [0], [0], [1], [0, 0, 1, 1], [], []>} : vector<64x128xbf16>, vector<128x128xbf16>, vector<64x128xf32> -> vector<64x128xf32>
    %12 = vector.broadcast %9 : vector<1x128xf32> to vector<64x128xf32>
    %13 = arith.addf %11, %12 : vector<64x128xf32>
    %cst_11 = arith.constant 0.000000e+00 : f32
    %14 = vector.broadcast %cst_11 : f32 to vector<64x128xf32>
    %15 = arith.maximumf %13, %14 : vector<64x128xf32>
    %16 = arith.truncf %15 : vector<64x128xf32> to vector<64x128xbf16>
    %c0_12 = arith.constant 0 : index
    %c0_13 = arith.constant 0 : index
    %17 = vector.load %arg6[%c0_12, %c0_13] : memref<128x128xbf16, #tpu.memory_space<vmem>>, vector<128x128xbf16>
    %cst_14 = arith.constant dense<0.000000e+00> : vector<64x128xf32>
    %18 = tpu.matmul %16, %17, %cst_14 {dimension_numbers = #tpu.dot_dimension_numbers<[1], [0], [0], [1], [0, 0, 1, 1], [], []>} : vector<64x128xbf16>, vector<128x128xbf16>, vector<64x128xf32> -> vector<64x128xf32>
    %c0_15 = arith.constant 0 : index
    %c0_16 = arith.constant 0 : index
    %19 = vector.load %arg7[%c0_15, %c0_16] : memref<1x128xf32, #tpu.memory_space<vmem>>, vector<1x128xf32>
    %20 = vector.broadcast %19 : vector<1x128xf32> to vector<64x128xf32>
    %21 = arith.addf %18, %20 : vector<64x128xf32>
    %22 = tpu.transpose %21, [1, 0] : vector<64x128xf32> -> vector<128x64xf32>
    %23 = vector.extract_strided_slice %22 {offsets = [0, 0], sizes = [1, 64], strides = [1, 1]} : vector<128x64xf32> to vector<1x64xf32>
    %c0_17 = arith.constant 0 : index
    %c0_18 = arith.constant 0 : index
    %24 = vector.load %arg8[%c0_17, %c0_18] : memref<1x64xf32, #tpu.memory_space<vmem>>, vector<1x64xf32>
    tpu.vector_store %arg8[%c0_17, %c0_18], %23 {strides = array<i32>} : memref<1x64xf32, #tpu.memory_space<vmem>>, vector<1x64xf32>,
    return
  }
  func.func @transform_0(%arg0: i32) -> (i32, i32) {
    %c0_i32 = arith.constant 0 : i32
    %c0_i32_0 = arith.constant 0 : i32
    return %arg0, %c0_i32 : i32, i32
  }
  func.func @transform_1(%arg0: i32) -> (i32, i32) {
    %c0_i32 = arith.constant 0 : i32
    %c0_i32_0 = arith.constant 0 : i32
    %c0_i32_1 = arith.constant 0 : i32
    return %c0_i32, %c0_i32_0 : i32, i32
  }
  func.func @transform_2(%arg0: i32) -> (i32, i32) {
    %c0_i32 = arith.constant 0 : i32
    %c0_i32_0 = arith.constant 0 : i32
    %c0_i32_1 = arith.constant 0 : i32
    return %c0_i32, %c0_i32_0 : i32, i32
  }
  func.func @transform_3(%arg0: i32) -> (i32, i32) {
    %c0_i32 = arith.constant 0 : i32
    %c0_i32_0 = arith.constant 0 : i32
    %c0_i32_1 = arith.constant 0 : i32
    return %c0_i32, %c0_i32_0 : i32, i32
  }
  func.func @transform_4(%arg0: i32) -> (i32, i32) {
    %c0_i32 = arith.constant 0 : i32
    %c0_i32_0 = arith.constant 0 : i32
    %c0_i32_1 = arith.constant 0 : i32
    return %c0_i32, %c0_i32_0 : i32, i32
  }
  func.func @transform_5(%arg0: i32) -> (i32, i32) {
    %c0_i32 = arith.constant 0 : i32
    %c0_i32_0 = arith.constant 0 : i32
    %c0_i32_1 = arith.constant 0 : i32
    return %c0_i32, %c0_i32_0 : i32, i32
  }
  func.func @transform_6(%arg0: i32) -> (i32, i32) {
    %c0_i32 = arith.constant 0 : i32
    %c0_i32_0 = arith.constant 0 : i32
    %c0_i32_1 = arith.constant 0 : i32
    return %c0_i32, %c0_i32_0 : i32, i32
  }
  func.func @transform_7(%arg0: i32) -> (i32, i32) {
    %c0_i32 = arith.constant 0 : i32
    %c0_i32_0 = arith.constant 0 : i32
    return %c0_i32, %arg0 : i32, i32
  }
}

module attributes {stable_mosaic.version = 11 : i64} {
  func.func @mlp_kernel(%arg0: i32, %arg1: memref<64x128xbf16, #tpu.memory_space<vmem>>, %arg2: memref<128x128xbf16, #tpu.memory_space<vmem>>, %arg3: memref<1x128xf32, #tpu.memory_space<vmem>>, %arg4: memref<128x128xbf16, #tpu.memory_space<vmem>>, %arg5: memref<1x128xf32, #tpu.memory_space<vmem>>, %arg6: memref<128x128xbf16, #tpu.memory_space<vmem>>, %arg7: memref<1x128xf32, #tpu.memory_space<vmem>>, %arg8: memref<1x64xf32, #tpu.memory_space<vmem>>) attributes {dimension_semantics = [#tpu.dimension_semantics<parallel>], iteration_bounds = array<i64: 1>, scalar_prefetch = 0 : i64, scratch_operands = 0 : i64, tpu.core_type = #tpu.core_type<tc>, window_params = [{transform_indices = @transform_0, window_bounds = array<i64: 64, 128>}, {pipeline_mode = #tpu.pipeline_mode<synchronous>, transform_indices = @transform_1, window_bounds = array<i64: 128, 128>}, {pipeline_mode = #tpu.pipeline_mode<synchronous>, transform_indices = @transform_2, window_bounds = array<i64: 1, 128>}, {pipeline_mode = #tpu.pipeline_mode<synchronous>, transform_indices = @transform_3, window_bounds = array<i64: 128, 128>}, {pipeline_mode = #tpu.pipeline_mode<synchronous>, transform_indices = @transform_4, window_bounds = array<i64: 1, 128>}, {pipeline_mode = #tpu.pipeline_mode<synchronous>, transform_indices = @transform_5, window_bounds = array<i64: 128, 128>}, {pipeline_mode = #tpu.pipeline_mode<synchronous>, transform_indices = @transform_6, window_bounds = array<i64: 1, 128>}, {transform_indices = @transform_7, window_bounds = array<i64: 1, 64>}]} {
    %c0 = arith.constant 0 : index
    %c0_0 = arith.constant 0 : index
    %0 = vector.load %arg1[%c0, %c0_0] : memref<64x128xbf16, #tpu.memory_space<vmem>>, vector<64x128xbf16>
    %c0_1 = arith.constant 0 : index
    %c0_2 = arith.constant 0 : index
    %1 = vector.load %arg2[%c0_1, %c0_2] : memref<128x128xbf16, #tpu.memory_space<vmem>>, vector<128x128xbf16>
    %cst = arith.constant dense<0.000000e+00> : vector<64x128xf32>
    %2 = tpu.matmul %0, %1, %cst {dimension_numbers = #tpu.dot_dimension_numbers<[1], [0], [0], [1], [0, 0, 1, 1], [], []>} : vector<64x128xbf16>, vector<128x128xbf16>, vector<64x128xf32> -> vector<64x128xf32>
    %c0_3 = arith.constant 0 : index
    %c0_4 = arith.constant 0 : index
    %3 = vector.load %arg3[%c0_3, %c0_4] : memref<1x128xf32, #tpu.memory_space<vmem>>, vector<1x128xf32>
    %4 = vector.broadcast %3 : vector<1x128xf32> to vector<64x128xf32>
    %5 = arith.addf %2, %4 : vector<64x128xf32>
    %cst_5 = arith.constant 0.000000e+00 : f32
    %6 = vector.broadcast %cst_5 : f32 to vector<64x128xf32>
    %7 = arith.maximumf %5, %6 : vector<64x128xf32>
    %c0_6 = arith.constant 0 : index
    %c0_7 = arith.constant 0 : index
    %8 = vector.load %arg4[%c0_6, %c0_7] : memref<128x128xbf16, #tpu.memory_space<vmem>>, vector<128x128xbf16>
    %c0_8 = arith.constant 0 : index
    %c0_9 = arith.constant 0 : index
    %9 = vector.load %arg5[%c0_8, %c0_9] : memref<1x128xf32, #tpu.memory_space<vmem>>, vector<1x128xf32>
    %10 = arith.truncf %7 : vector<64x128xf32> to vector<64x128xbf16>
    %cst_10 = arith.constant dense<0.000000e+00> : vector<64x128xf32>
    %11 = tpu.matmul %10, %8, %cst_10 {dimension_numbers = #tpu.dot_dimension_numbers<[1], [0], [0], [1], [0, 0, 1, 1], [], []>} : vector<64x128xbf16>, vector<128x128xbf16>, vector<64x128xf32> -> vector<64x128xf32>
    %12 = vector.broadcast %9 : vector<1x128xf32> to vector<64x128xf32>
    %13 = arith.addf %11, %12 : vector<64x128xf32>
    %cst_11 = arith.constant 0.000000e+00 : f32
    %14 = vector.broadcast %cst_11 : f32 to vector<64x128xf32>
    %15 = arith.maximumf %13, %14 : vector<64x128xf32>
    %16 = arith.truncf %15 : vector<64x128xf32> to vector<64x128xbf16>
    %c0_12 = arith.constant 0 : index
    %c0_13 = arith.constant 0 : index
    %17 = vector.load %arg6[%c0_12, %c0_13] : memref<128x128xbf16, #tpu.memory_space<vmem>>, vector<128x128xbf16>
    %cst_14 = arith.constant dense<0.000000e+00> : vector<64x128xf32>
    %18 = tpu.matmul %16, %17, %cst_14 {dimension_numbers = #tpu.dot_dimension_numbers<[1], [0], [0], [1], [0, 0, 1, 1], [], []>} : vector<64x128xbf16>, vector<128x128xbf16>, vector<64x128xf32> -> vector<64x128xf32>
    %c0_15 = arith.constant 0 : index
    %c0_16 = arith.constant 0 : index
    %19 = vector.load %arg7[%c0_15, %c0_16] : memref<1x128xf32, #tpu.memory_space<vmem>>, vector<1x128xf32>
    %20 = vector.broadcast %19 : vector<1x128xf32> to vector<64x128xf32>
    %21 = arith.addf %18, %20 : vector<64x128xf32>
    %22 = tpu.transpose %21, [1, 0] : vector<64x128xf32> -> vector<128x64xf32>
    %23 = vector.extract_strided_slice %22 {offsets = [0, 0], sizes = [1, 64], strides = [1, 1]} : vector<128x64xf32> to vector<1x64xf32>
    %c0_17 = arith.constant 0 : index
    %c0_18 = arith.constant 0 : index
    %24 = vector.load %arg8[%c0_17, %c0_18] : memref<1x64xf32, #tpu.memory_space<vmem>>, vector<1x64xf32>
    tpu.vector_store %arg8[%c0_17, %c0_18], %23 {strides = array<i32>} : memref<1x64xf32, #tpu.memory_space<vmem>>, vector<1x64xf32>,
    return
  }
  func.func @transform_0(%arg0: i32) -> (i32, i32) {
    %c0_i32 = arith.constant 0 : i32
    %c0_i32_0 = arith.constant 0 : i32
    return %arg0, %c0_i32 : i32, i32
  }
  func.func @transform_1(%arg0: i32) -> (i32, i32) {
    %c0_i32 = arith.constant 0 : i32
    %c0_i32_0 = arith.constant 0 : i32
    %c0_i32_1 = arith.constant 0 : i32
    return %c0_i32, %c0_i32_0 : i32, i32
  }
  func.func @transform_2(%arg0: i32) -> (i32, i32) {
    %c0_i32 = arith.constant 0 : i32
    %c0_i32_0 = arith.constant 0 : i32
    %c0_i32_1 = arith.constant 0 : i32
    return %c0_i32, %c0_i32_0 : i32, i32
  }
  func.func @transform_3(%arg0: i32) -> (i32, i32) {
    %c0_i32 = arith.constant 0 : i32
    %c0_i32_0 = arith.constant 0 : i32
    %c0_i32_1 = arith.constant 0 : i32
    return %c0_i32, %c0_i32_0 : i32, i32
  }
  func.func @transform_4(%arg0: i32) -> (i32, i32) {
    %c0_i32 = arith.constant 0 : i32
    %c0_i32_0 = arith.constant 0 : i32
    %c0_i32_1 = arith.constant 0 : i32
    return %c0_i32, %c0_i32_0 : i32, i32
  }
  func.func @transform_5(%arg0: i32) -> (i32, i32) {
    %c0_i32 = arith.constant 0 : i32
    %c0_i32_0 = arith.constant 0 : i32
    %c0_i32_1 = arith.constant 0 : i32
    return %c0_i32, %c0_i32_0 : i32, i32
  }
  func.func @transform_6(%arg0: i32) -> (i32, i32) {
    %c0_i32 = arith.constant 0 : i32
    %c0_i32_0 = arith.constant 0 : i32
    %c0_i32_1 = arith.constant 0 : i32
    return %c0_i32, %c0_i32_0 : i32, i32
  }
  func.func @transform_7(%arg0: i32) -> (i32, i32) {
    %c0_i32 = arith.constant 0 : i32
    %c0_i32_0 = arith.constant 0 : i32
    return %c0_i32, %arg0 : i32, i32
  }
}

</mosaic_0001>

<llo_original>
// kernel: tpu_custom_call.1
$region0: #{tpu_custom_call.1}
  #allocation0 [shape = 'u32[]', space=smem, size = 0x4, offset = 0x4, fixed_abs, tag = 'smem constant byte address 0x4 - core index']
  #allocation1 [shape = 'u32[72,128]{1,0:T(1,128)}', space=vmem, size = 0x9000, scoped, tag = 'internal scratch']
  %s0 = inlined_call_operand.hbm [shape: bf16[64,128], index: 0, kind: input, shape index: {}]
  %s1 = inlined_call_operand.hbm [shape: bf16[128,128], index: 1, kind: input, shape index: {}]
  %s2 = inlined_call_operand.vmem [shape: f32[1,128], index: 2, kind: input, shape index: {}]
  %s3 = inlined_call_operand.hbm [shape: bf16[128,128], index: 3, kind: input, shape index: {}]
  %s4 = inlined_call_operand.vmem [shape: f32[1,128], index: 4, kind: input, shape index: {}]
  %s5 = inlined_call_operand.hbm [shape: bf16[128,128], index: 5, kind: input, shape index: {}]
  %s6 = inlined_call_operand.vmem [shape: f32[1,128], index: 6, kind: input, shape index: {}]
  %s7 = inlined_call_operand.hbm [shape: f32[1,64], index: 7, kind: output, shape index: {}]
  %s8 = sld [smem:[#allocation0]]
  $region54: #{tpu_custom_call.1} parent=0
    _
  %s10 = ssub.s32 1, %s8
  %s11 = scalar_select 0, %s10, %s8
  $region1: #{tpu_custom_call.1} parent=0
    #allocation2 [shape = 'u8[16384]{0}', space=vmem, size = 0x4000, scoped, tag = 'input window, operand 0, single buffered']
    #allocation3 [shape = 's32[1]{0}', space=sflag, size = 0x4, scoped, tag = 'scoped memory for tpu_custom_call.1']
    #allocation4 [shape = 's32[1]{0}', space=sflag, size = 0x4, scoped, tag = 'scoped memory for tpu_custom_call.1']
    #allocation5 [shape = 'u8[32768]{0}', space=vmem, size = 0x8000, scoped, tag = 'input window, operand 1, single buffered']
    #allocation6 [shape = 's32[1]{0}', space=sflag, size = 0x4, scoped, tag = 'scoped memory for tpu_custom_call.1']
    #allocation7 [shape = 'u8[32768]{0}', space=vmem, size = 0x8000, scoped, tag = 'input window, operand 3, single buffered']
    #allocation8 [shape = 'u8[32768]{0}', space=vmem, size = 0x8000, scoped, tag = 'input window, operand 5, single buffered']
    #allocation9 [shape = 's32[1]{0}', space=sflag, size = 0x4, scoped, tag = 'scoped memory for tpu_custom_call.1']
    #allocation10 [shape = 'u8[512]{0}', space=vmem, size = 0x400, scoped, tag = 'output window, operand 0, single buffered']
    %12 = vsyncpa [#allocation3], 0
    %13 = vsyncpa [#allocation6], 0
    %14 = vsyncpa [#allocation9], 0
    %15 = vsyncpa [#allocation4], 0
    // Predicated region
    $region2: #{tpu_custom_call.1} parent=1 // pred_check
      _
    $region3: #{tpu_custom_call.1} parent=1 // pred_check_branch
      %17 = sbr.rel (0) target = $region5
    $region4: #{tpu_custom_call.1} parent=1 // pred_region
      %19 = vsyncadd [#allocation3], 0
      %s20 = sshll.u32 %s0, 4
      %s21 = int_to_ptr.hbm [resolvable:$true] %s20
      %s22 = sshll.u32 [#allocation2], 4
      %s23 = int_to_ptr.vmem [resolvable:$true] %s22
      %28 = dma.hbm_to_vmem [thread:$0]  %s21, 512, %s23, [#allocation3], 64, 64, 4
    $region5: #{tpu_custom_call.1} parent=1 // pred_fallthru
      _
    // Predicated region
    $region6: #{tpu_custom_call.1} parent=1 // pred_check
      _
    $region7: #{tpu_custom_call.1} parent=1 // pred_check_branch
      %30 = sbr.rel (0) target = $region9
    $region8: #{tpu_custom_call.1} parent=1 // pred_region
      %32 = vsyncadd [#allocation6], 0
      %s33 = sshll.u32 %s1, 4
      %s34 = int_to_ptr.hbm [resolvable:$true] %s33
      %s35 = sshll.u32 [#allocation5], 4
      %s36 = int_to_ptr.vmem [resolvable:$true] %s35
      %41 = dma.hbm_to_vmem [thread:$0]  %s34, 1024, %s36, [#allocation6], 64, 64, 4
    $region9: #{tpu_custom_call.1} parent=1 // pred_fallthru
      _
    // Predicated region
    $region10: #{tpu_custom_call.1} parent=1 // pred_check
      _
    $region11: #{tpu_custom_call.1} parent=1 // pred_check_branch
      %43 = sbr.rel (0) target = $region13
    $region12: #{tpu_custom_call.1} parent=1 // pred_region
      _
    $region13: #{tpu_custom_call.1} parent=1 // pred_fallthru
      _
    // Predicated region
    $region14: #{tpu_custom_call.1} parent=1 // pred_check
      _
    $region15: #{tpu_custom_call.1} parent=1 // pred_check_branch
      %45 = sbr.rel (0) target = $region17
    $region16: #{tpu_custom_call.1} parent=1 // pred_region
      %47 = vsyncadd [#allocation6], 0
      %s48 = sshll.u32 %s3, 4
      %s49 = int_to_ptr.hbm [resolvable:$true] %s48
      %s50 = sshll.u32 [#allocation7], 4
      %s51 = int_to_ptr.vmem [resolvable:$true] %s50
      %56 = dma.hbm_to_vmem [thread:$0]  %s49, 1024, %s51, [#allocation6], 64, 64, 4
    $region17: #{tpu_custom_call.1} parent=1 // pred_fallthru
      _
    // Predicated region
    $region18: #{tpu_custom_call.1} parent=1 // pred_check
      _
    $region19: #{tpu_custom_call.1} parent=1 // pred_check_branch
      %58 = sbr.rel (0) target = $region21
    $region20: #{tpu_custom_call.1} parent=1 // pred_region
      _
    $region21: #{tpu_custom_call.1} parent=1 // pred_fallthru
      _
    // Predicated region
    $region22: #{tpu_custom_call.1} parent=1 // pred_check
      _
    $region23: #{tpu_custom_call.1} parent=1 // pred_check_branch
      %60 = sbr.rel (0) target = $region25
    $region24: #{tpu_custom_call.1} parent=1 // pred_region
      %62 = vsyncadd [#allocation9], 0
      %s63 = sshll.u32 %s5, 4
      %s64 = int_to_ptr.hbm [resolvable:$true] %s63
      %s65 = sshll.u32 [#allocation8], 4
      %s66 = int_to_ptr.vmem [resolvable:$true] %s65
      %71 = dma.hbm_to_vmem [thread:$0]  %s64, 1024, %s66, [#allocation9], 64, 64, 4
    $region25: #{tpu_custom_call.1} parent=1 // pred_fallthru
      _
    // Predicated region
    $region26: #{tpu_custom_call.1} parent=1 // pred_check
      _
    $region27: #{tpu_custom_call.1} parent=1 // pred_check_branch
      %73 = sbr.rel (0) target = $region29
    $region28: #{tpu_custom_call.1} parent=1 // pred_region
      _
    $region29: #{tpu_custom_call.1} parent=1 // pred_fallthru
      _
    // Predicated region
    $region30: #{tpu_custom_call.1} parent=1 // pred_check
      _
    $region31: #{tpu_custom_call.1} parent=1 // pred_check_branch
      %75 = sbr.rel (0) target = $region33
    $region32: #{tpu_custom_call.1} parent=1 // pred_region
      %77 = dma.done [#allocation3], 512
    $region33: #{tpu_custom_call.1} parent=1 // pred_fallthru
      _
    // Predicated region
    $region34: #{tpu_custom_call.1} parent=1 // pred_check
      _
    $region35: #{tpu_custom_call.1} parent=1 // pred_check_branch
      %79 = sbr.rel (0) target = $region37
    $region36: #{tpu_custom_call.1} parent=1 // pred_region
      %81 = dma.done [#allocation6], 1024
    $region37: #{tpu_custom_call.1} parent=1 // pred_fallthru
      _
    // Predicated region
    $region38: #{tpu_custom_call.1} parent=1 // pred_check
      _
    $region39: #{tpu_custom_call.1} parent=1 // pred_check_branch
      %83 = sbr.rel (0) target = $region41
    $region40: #{tpu_custom_call.1} parent=1 // pred_region
      %85 = dma.done [#allocation6], 1024
    $region41: #{tpu_custom_call.1} parent=1 // pred_fallthru
      _
    // Predicated region
    $region42: #{tpu_custom_call.1} parent=1 // pred_check
      _
    $region43: #{tpu_custom_call.1} parent=1 // pred_check_branch
      %87 = sbr.rel (0) target = $region45
    $region44: #{tpu_custom_call.1} parent=1 // pred_region
      %89 = dma.done [#allocation9], 1024
    $region45: #{tpu_custom_call.1} parent=1 // pred_fallthru
      _
    %v90 = vld [vmem:[#allocation2] sm:$0xf]
    %v91 = vld [vmem:[#allocation2 + $0x4] sm:$0xf]
    %v92 = vld [vmem:[#allocation2 + $0x8] sm:$0xf]
    %v93 = vld [vmem:[#allocation2 + $0xc] sm:$0xf]
    %v94 = vld [vmem:[#allocation2 + $0x10] sm:$0xf]
    %v95 = vld [vmem:[#allocation2 + $0x14] sm:$0xf]
    %v96 = vld [vmem:[#allocation2 + $0x18] sm:$0xf]
    %v97 = vld [vmem:[#allocation2 + $0x1c] sm:$0xf]
    %v98 = vld [vmem:[#allocation5] sm:$0xf]
    %v99 = vld [vmem:[#allocation5 + $0x4] sm:$0xf]
    %v100 = vld [vmem:[#allocation5 + $0x8] sm:$0xf]
    %v101 = vld [vmem:[#allocation5 + $0xc] sm:$0xf]
    %v102 = vld [vmem:[#allocation5 + $0x10] sm:$0xf]
    %v103 = vld [vmem:[#allocation5 + $0x14] sm:$0xf]
    %v104 = vld [vmem:[#allocation5 + $0x18] sm:$0xf]
    %v105 = vld [vmem:[#allocation5 + $0x1c] sm:$0xf]
    %v106 = vld [vmem:[#allocation5 + $0x20] sm:$0xf]
    %v107 = vld [vmem:[#allocation5 + $0x24] sm:$0xf]
    %v108 = vld [vmem:[#allocation5 + $0x28] sm:$0xf]
    %v109 = vld [vmem:[#allocation5 + $0x2c] sm:$0xf]
    %v110 = vld [vmem:[#allocation5 + $0x30] sm:$0xf]
    %v111 = vld [vmem:[#allocation5 + $0x34] sm:$0xf]
    %v112 = vld [vmem:[#allocation5 + $0x38] sm:$0xf]
    %v113 = vld [vmem:[#allocation5 + $0x3c] sm:$0xf]
    %v114 = vld [vmem:[%s2] sm:$0x1]
    %v116 = vperm.slane %v114, 0
    %v126 = vunpack.c.l.b16 %v90
    %v127 = vunpack.c.l.b16 %v91
    %v128 = vunpack.c.l.b16 %v92
    %v129 = vunpack.c.l.b16 %v93
    %v130 = vunpack.c.l.b16 %v94
    %v131 = vunpack.c.l.b16 %v95
    %v132 = vunpack.c.l.b16 %v96
    %v133 = vunpack.c.l.b16 %v97
    %v134 = vpack.c.b16 %v127, %v126
    %v135 = vpack.c.b16 %v129, %v128
    %v136 = vpack.c.b16 %v131, %v130
    %v137 = vpack.c.b16 %v133, %v132
    %v158 = vunpack.c.l.b16 %v98
    %v159 = vunpack.c.l.b16 %v99
    %v160 = vunpack.c.l.b16 %v100
    %v161 = vunpack.c.l.b16 %v101
    %v162 = vunpack.c.l.b16 %v102
    %v163 = vunpack.c.l.b16 %v103
    %v164 = vunpack.c.l.b16 %v104
    %v165 = vunpack.c.l.b16 %v105
    %v166 = vunpack.c.l.b16 %v106
    %v167 = vunpack.c.l.b16 %v107
    %v168 = vunpack.c.l.b16 %v108
    %v169 = vunpack.c.l.b16 %v109
    %v170 = vunpack.c.l.b16 %v110
    %v171 = vunpack.c.l.b16 %v111
    %v172 = vunpack.c.l.b16 %v112
    %v173 = vunpack.c.l.b16 %v113
    %v174 = vpack.c.b16 %v159, %v158
    %v175 = vpack.c.b16 %v161, %v160
    %v176 = vpack.c.b16 %v163, %v162
    %v177 = vpack.c.b16 %v165, %v164
    %v178 = vpack.c.b16 %v167, %v166
    %v179 = vpack.c.b16 %v169, %v168
    %v180 = vpack.c.b16 %v171, %v170
    %v181 = vpack.c.b16 %v173, %v172
    %190 = vmatpush.bf16.msra.mxu0 %v181
    %191 = vmatpush.bf16.msra.mxu0 %v180
    %192 = vmatpush.bf16.msra.mxu0 %v179
    %193 = vmatpush.bf16.msra.mxu0 %v178
    %194 = vmatpush.bf16.msra.mxu0 %v177
    %195 = vmatpush.bf16.msra.mxu0 %v176
    %196 = vmatpush.bf16.msra.mxu0 %v175
    %197 = vmatpush.bf16.msra.mxu0 %v174
    %198 = vmatmul.bf16.gmra.mxu0 %v134
    %v199 = vpop.f32.mrf.mxu0
    %v200 = vadd.f32 %v116, %v199
    %v201 = vpop.f32.mrf.mxu0
    %v202 = vadd.f32 %v116, %v201
    %203 = vmatmul.bf16.gmra.mxu0 %v135
    %v204 = vpop.f32.mrf.mxu0
    %v205 = vadd.f32 %v116, %v204
    %v206 = vpop.f32.mrf.mxu0
    %v207 = vadd.f32 %v116, %v206
    %208 = vmatmul.bf16.gmra.mxu0 %v136
    %v209 = vpop.f32.mrf.mxu0
    %v210 = vadd.f32 %v116, %v209
    %v211 = vpop.f32.mrf.mxu0
    %v212 = vadd.f32 %v116, %v211
    %213 = vmatmul.bf16.gmra.mxu0 %v137
    %v214 = vpop.f32.mrf.mxu0
    %v215 = vadd.f32 %v116, %v214
    %v216 = vpop.f32.mrf.mxu0
    %v217 = vadd.f32 %v116, %v216
    %218 = vdwg.mxu0
    %v219 = vmax.f32 %v200, 0.0
    %v220 = vmax.f32 %v202, 0.0
    %v221 = vmax.f32 %v205, 0.0
    %v222 = vmax.f32 %v207, 0.0
    %v223 = vmax.f32 %v210, 0.0
    %v224 = vmax.f32 %v212, 0.0
    %v225 = vmax.f32 %v215, 0.0
    %v226 = vmax.f32 %v217, 0.0
    %v227 = vld [vmem:[#allocation7] sm:$0xf]
    %v228 = vld [vmem:[#allocation7 + $0x4] sm:$0xf]
    %v229 = vld [vmem:[#allocation7 + $0x8] sm:$0xf]
    %v230 = vld [vmem:[#allocation7 + $0xc] sm:$0xf]
    %v231 = vld [vmem:[#allocation7 + $0x10] sm:$0xf]
    %v232 = vld [vmem:[#allocation7 + $0x14] sm:$0xf]
    %v233 = vld [vmem:[#allocation7 + $0x18] sm:$0xf]
    %v234 = vld [vmem:[#allocation7 + $0x1c] sm:$0xf]
    %v235 = vld [vmem:[#allocation7 + $0x20] sm:$0xf]
    %v236 = vld [vmem:[#allocation7 + $0x24] sm:$0xf]
    %v237 = vld [vmem:[#allocation7 + $0x28] sm:$0xf]
    %v238 = vld [vmem:[#allocation7 + $0x2c] sm:$0xf]
    %v239 = vld [vmem:[#allocation7 + $0x30] sm:$0xf]
    %v240 = vld [vmem:[#allocation7 + $0x34] sm:$0xf]
    %v241 = vld [vmem:[#allocation7 + $0x38] sm:$0xf]
    %v242 = vld [vmem:[#allocation7 + $0x3c] sm:$0xf]
    %v243 = vld [vmem:[%s4] sm:$0x1]
    %v244 = vpack.c.bf16 %v220, %v219
    %v245 = vpack.c.bf16 %v222, %v221
    %v246 = vpack.c.bf16 %v224, %v223
    %v247 = vpack.c.bf16 %v226, %v225
    %v249 = vperm.slane %v243, 0
    %v267 = vunpack.c.l.b16 %v227
    %v268 = vunpack.c.l.b16 %v228
    %v269 = vunpack.c.l.b16 %v229
    %v270 = vunpack.c.l.b16 %v230
    %v271 = vunpack.c.l.b16 %v231
    %v272 = vunpack.c.l.b16 %v232
    %v273 = vunpack.c.l.b16 %v233
    %v274 = vunpack.c.l.b16 %v234
    %v275 = vunpack.c.l.b16 %v235
    %v276 = vunpack.c.l.b16 %v236
    %v277 = vunpack.c.l.b16 %v237
    %v278 = vunpack.c.l.b16 %v238
    %v279 = vunpack.c.l.b16 %v239
    %v280 = vunpack.c.l.b16 %v240
    %v281 = vunpack.c.l.b16 %v241
    %v282 = vunpack.c.l.b16 %v242
    %v283 = vpack.c.b16 %v268, %v267
    %v284 = vpack.c.b16 %v270, %v269
    %v285 = vpack.c.b16 %v272, %v271
    %v286 = vpack.c.b16 %v274, %v273
    %v287 = vpack.c.b16 %v276, %v275
    %v288 = vpack.c.b16 %v278, %v277
    %v289 = vpack.c.b16 %v280, %v279
    %v290 = vpack.c.b16 %v282, %v281
    %299 = vmatpush.bf16.msra.mxu0 %v290
    %300 = vmatpush.bf16.msra.mxu0 %v289
    %301 = vmatpush.bf16.msra.mxu0 %v288
    %302 = vmatpush.bf16.msra.mxu0 %v287
    %303 = vmatpush.bf16.msra.mxu0 %v286
    %304 = vmatpush.bf16.msra.mxu0 %v285
    %305 = vmatpush.bf16.msra.mxu0 %v284
    %306 = vmatpush.bf16.msra.mxu0 %v283
    %307 = vmatmul.bf16.gmra.mxu0 %v244
    %v308 = vpop.f32.mrf.mxu0
    %v309 = vadd.f32 %v249, %v308
    %v310 = vpop.f32.mrf.mxu0
    %v311 = vadd.f32 %v249, %v310
    %312 = vmatmul.bf16.gmra.mxu0 %v245
    %v313 = vpop.f32.mrf.mxu0
    %v314 = vadd.f32 %v249, %v313
    %v315 = vpop.f32.mrf.mxu0
    %v316 = vadd.f32 %v249, %v315
    %317 = vmatmul.bf16.gmra.mxu0 %v246
    %v318 = vpop.f32.mrf.mxu0
    %v319 = vadd.f32 %v249, %v318
    %v320 = vpop.f32.mrf.mxu0
    %v321 = vadd.f32 %v249, %v320
    %322 = vmatmul.bf16.gmra.mxu0 %v247
    %v323 = vpop.f32.mrf.mxu0
    %v324 = vadd.f32 %v249, %v323
    %v325 = vpop.f32.mrf.mxu0
    %v326 = vadd.f32 %v249, %v325
    %327 = vdwg.mxu0
    %v328 = vmax.f32 %v309, 0.0
    %v329 = vmax.f32 %v311, 0.0
    %v330 = vmax.f32 %v314, 0.0
    %v331 = vmax.f32 %v316, 0.0
    %v332 = vmax.f32 %v319, 0.0
    %v333 = vmax.f32 %v321, 0.0
    %v334 = vmax.f32 %v324, 0.0
    %v335 = vmax.f32 %v326, 0.0
    %v336 = vpack.c.bf16 %v329, %v328
    %v337 = vpack.c.bf16 %v331, %v330
    %v338 = vpack.c.bf16 %v333, %v332
    %v339 = vpack.c.bf16 %v335, %v334
    %v340 = vld [vmem:[#allocation8] sm:$0xf]
    %v341 = vld [vmem:[#allocation8 + $0x4] sm:$0xf]
    %v342 = vld [vmem:[#allocation8 + $0x8] sm:$0xf]
    %v343 = vld [vmem:[#allocation8 + $0xc] sm:$0xf]
    %v344 = vld [vmem:[#allocation8 + $0x10] sm:$0xf]
    %v345 = vld [vmem:[#allocation8 + $0x14] sm:$0xf]
    %v346 = vld [vmem:[#allocation8 + $0x18] sm:$0xf]
    %v347 = vld [vmem:[#allocation8 + $0x1c] sm:$0xf]
    %v348 = vld [vmem:[#allocation8 + $0x20] sm:$0xf]
    %v349 = vld [vmem:[#allocation8 + $0x24] sm:$0xf]
    %v350 = vld [vmem:[#allocation8 + $0x28] sm:$0xf]
    %v351 = vld [vmem:[#allocation8 + $0x2c] sm:$0xf]
    %v352 = vld [vmem:[#allocation8 + $0x30] sm:$0xf]
    %v353 = vld [vmem:[#allocation8 + $0x34] sm:$0xf]
    %v354 = vld [vmem:[#allocation8 + $0x38] sm:$0xf]
    %v355 = vld [vmem:[#allocation8 + $0x3c] sm:$0xf]
    %v356 = vld [vmem:[%s6] sm:$0x1]
    %v358 = vperm.slane %v356, 0
    %v376 = vunpack.c.l.b16 %v340
    %v377 = vunpack.c.l.b16 %v341
    %v378 = vunpack.c.l.b16 %v342
    %v379 = vunpack.c.l.b16 %v343
    %v380 = vunpack.c.l.b16 %v344
    %v381 = vunpack.c.l.b16 %v345
    %v382 = vunpack.c.l.b16 %v346
    %v383 = vunpack.c.l.b16 %v347
    %v384 = vunpack.c.l.b16 %v348
    %v385 = vunpack.c.l.b16 %v349
    %v386 = vunpack.c.l.b16 %v350
    %v387 = vunpack.c.l.b16 %v351
    %v388 = vunpack.c.l.b16 %v352
    %v389 = vunpack.c.l.b16 %v353
    %v390 = vunpack.c.l.b16 %v354
    %v391 = vunpack.c.l.b16 %v355
    %v392 = vpack.c.b16 %v377, %v376
    %v393 = vpack.c.b16 %v379, %v378
    %v394 = vpack.c.b16 %v381, %v380
    %v395 = vpack.c.b16 %v383, %v382
    %v396 = vpack.c.b16 %v385, %v384
    %v397 = vpack.c.b16 %v387, %v386
    %v398 = vpack.c.b16 %v389, %v388
    %v399 = vpack.c.b16 %v391, %v390
    %408 = vmatpush.bf16.msra.mxu0 %v399
    %409 = vmatpush.bf16.msra.mxu0 %v398
    %410 = vmatpush.bf16.msra.mxu0 %v397
    %411 = vmatpush.bf16.msra.mxu0 %v396
    %412 = vmatpush.bf16.msra.mxu0 %v395
    %413 = vmatpush.bf16.msra.mxu0 %v394
    %414 = vmatpush.bf16.msra.mxu0 %v393
    %415 = vmatpush.bf16.msra.mxu0 %v392
    %416 = vmatmul.bf16.gmra.mxu0 %v336
    %v417 = vpop.f32.mrf.mxu0
    %v418 = vadd.f32 %v358, %v417
    %v419 = vpop.f32.mrf.mxu0
    %v420 = vadd.f32 %v358, %v419
    %421 = vmatmul.bf16.gmra.mxu0 %v337
    %v422 = vpop.f32.mrf.mxu0
    %v423 = vadd.f32 %v358, %v422
    %v424 = vpop.f32.mrf.mxu0
    %v425 = vadd.f32 %v358, %v424
    %426 = vmatmul.bf16.gmra.mxu0 %v338
    %v427 = vpop.f32.mrf.mxu0
    %v428 = vadd.f32 %v358, %v427
    %v429 = vpop.f32.mrf.mxu0
    %v430 = vadd.f32 %v358, %v429
    %431 = vmatmul.bf16.gmra.mxu0 %v339
    %v432 = vpop.f32.mrf.mxu0
    %v433 = vadd.f32 %v358, %v432
    %v434 = vpop.f32.mrf.mxu0
    %v435 = vadd.f32 %v358, %v434
    %436 = vdwg.mxu0
    %437 = vxpose.xlu0.b32.start [1/16] %v418, 128
    %438 = vxpose.xlu0.b32.cont [2/16] %v420, 128
    %439 = vxpose.xlu0.b32.cont [3/16] %v423, 128
    %440 = vxpose.xlu0.b32.cont [4/16] %v425, 128
    %441 = vxpose.xlu0.b32.cont [5/16] %v428, 128
    %442 = vxpose.xlu0.b32.cont [6/16] %v430, 128
    %443 = vxpose.xlu0.b32.cont [7/16] %v433, 128
    %444 = vxpose.xlu0.b32.cont [8/16] %v435, 128
    %445 = vxpose.xlu0.b32.cont [9/16] 0.0, 128
    %446 = vxpose.xlu0.b32.cont [10/16] 0.0, 128
    %447 = vxpose.xlu0.b32.cont [11/16] 0.0, 128
    %448 = vxpose.xlu0.b32.cont [12/16] 0.0, 128
    %449 = vxpose.xlu0.b32.cont [13/16] 0.0, 128
    %450 = vxpose.xlu0.b32.cont [14/16] 0.0, 128
    %451 = vxpose.xlu0.b32.cont [15/16] 0.0, 128
    %452 = vxpose.xlu0.b32.end [16/16] 0.0, 128
    %v453 = vpop.trf.xlu0
    %v454 = vpop.trf.xlu0
    %v455 = vpop.trf.xlu0
    %v456 = vpop.trf.xlu0
    %v457 = vpop.trf.xlu0
    %v458 = vpop.trf.xlu0
    %v459 = vpop.trf.xlu0
    %v460 = vpop.trf.xlu0
    %v461 = vpop.trf.xlu0
    %v462 = vpop.trf.xlu0
    %v463 = vpop.trf.xlu0
    %v464 = vpop.trf.xlu0
    %v465 = vpop.trf.xlu0
    %v466 = vpop.trf.xlu0
    %v467 = vpop.trf.xlu0
    %v468 = vpop.trf.xlu0
    %vm469 = vcmask 516096
    %470 = vst.msk [vmem:[#allocation10] sm:$0x1] %vm469, %v453
    // Predicated region
    $region46: #{tpu_custom_call.1} parent=1 // pred_check
      _
    $region47: #{tpu_custom_call.1} parent=1 // pred_check_branch
      %472 = sbr.rel (0) target = $region49
    $region48: #{tpu_custom_call.1} parent=1 // pred_region
      %474 = vsyncadd [#allocation4], 0
      %s476 = sshll.u32 [#allocation10], 4
      %s477 = int_to_ptr.vmem [resolvable:$true] %s476
      %s478 = sshll.u32 %s7, 4
      %s479 = int_to_ptr.hbm [resolvable:$true] %s478
      %481 = dma.vmem_to_hbm [thread:$0]  %s477, 16, %s479, [#allocation4]
    $region49: #{tpu_custom_call.1} parent=1 // pred_fallthru
      _
    // Predicated region
    $region50: #{tpu_custom_call.1} parent=1 // pred_check
      _
    $region51: #{tpu_custom_call.1} parent=1 // pred_check_branch
      %483 = sbr.rel (0) target = $region53
    $region52: #{tpu_custom_call.1} parent=1 // pred_region
      %485 = dma.done [#allocation4], 16
    $region53: #{tpu_custom_call.1} parent=1 // pred_fallthru
      _
    %486 = vsyncpa [#allocation3], 1
    %487 = vsyncpa [#allocation6], 1
    %488 = vsyncpa [#allocation9], 1
    %489 = vsyncpa [#allocation4], 1

// kernel: tpu_custom_call.1
$region0: #{tpu_custom_call.1}
  #allocation0 [shape = 'u32[]', space=smem, size = 0x4, offset = 0x4, fixed_abs, tag = 'smem constant byte address 0x4 - core index']
  #allocation1 [shape = 'u32[72,128]{1,0:T(1,128)}', space=vmem, size = 0x9000, scoped, tag = 'internal scratch']
  %s0 = inlined_call_operand.hbm [shape: bf16[64,128], index: 0, kind: input, shape index: {}]
  %s1 = inlined_call_operand.hbm [shape: bf16[128,128], index: 1, kind: input, shape index: {}]
  %s2 = inlined_call_operand.vmem [shape: f32[1,128], index: 2, kind: input, shape index: {}]
  %s3 = inlined_call_operand.hbm [shape: bf16[128,128], index: 3, kind: input, shape index: {}]
  %s4 = inlined_call_operand.vmem [shape: f32[1,128], index: 4, kind: input, shape index: {}]
  %s5 = inlined_call_operand.hbm [shape: bf16[128,128], index: 5, kind: input, shape index: {}]
  %s6 = inlined_call_operand.vmem [shape: f32[1,128], index: 6, kind: input, shape index: {}]
  %s7 = inlined_call_operand.hbm [shape: f32[1,64], index: 7, kind: output, shape index: {}]
  %s8 = sld [smem:[#allocation0]]
  $region54: #{tpu_custom_call.1} parent=0
    _
  %s10 = ssub.s32 1, %s8
  %s11 = scalar_select 0, %s10, %s8
  $region1: #{tpu_custom_call.1} parent=0
    #allocation2 [shape = 'u8[16384]{0}', space=vmem, size = 0x4000, scoped, tag = 'input window, operand 0, single buffered']
    #allocation3 [shape = 's32[1]{0}', space=sflag, size = 0x4, scoped, tag = 'scoped memory for tpu_custom_call.1']
    #allocation4 [shape = 's32[1]{0}', space=sflag, size = 0x4, scoped, tag = 'scoped memory for tpu_custom_call.1']
    #allocation5 [shape = 'u8[32768]{0}', space=vmem, size = 0x8000, scoped, tag = 'input window, operand 1, single buffered']
    #allocation6 [shape = 's32[1]{0}', space=sflag, size = 0x4, scoped, tag = 'scoped memory for tpu_custom_call.1']
    #allocation7 [shape = 'u8[32768]{0}', space=vmem, size = 0x8000, scoped, tag = 'input window, operand 3, single buffered']
    #allocation8 [shape = 'u8[32768]{0}', space=vmem, size = 0x8000, scoped, tag = 'input window, operand 5, single buffered']
    #allocation9 [shape = 's32[1]{0}', space=sflag, size = 0x4, scoped, tag = 'scoped memory for tpu_custom_call.1']
    #allocation10 [shape = 'u8[512]{0}', space=vmem, size = 0x400, scoped, tag = 'output window, operand 0, single buffered']
    %12 = vsyncpa [#allocation3], 0
    %13 = vsyncpa [#allocation6], 0
    %14 = vsyncpa [#allocation9], 0
    %15 = vsyncpa [#allocation4], 0
    // Predicated region
    $region2: #{tpu_custom_call.1} parent=1 // pred_check
      _
    $region3: #{tpu_custom_call.1} parent=1 // pred_check_branch
      %17 = sbr.rel (0) target = $region5
    $region4: #{tpu_custom_call.1} parent=1 // pred_region
      %19 = vsyncadd [#allocation3], 0
      %s20 = sshll.u32 %s0, 4
      %s21 = int_to_ptr.hbm [resolvable:$true] %s20
      %s22 = sshll.u32 [#allocation2], 4
      %s23 = int_to_ptr.vmem [resolvable:$true] %s22
      %28 = dma.hbm_to_vmem [thread:$0]  %s21, 512, %s23, [#allocation3], 64, 64, 4
    $region5: #{tpu_custom_call.1} parent=1 // pred_fallthru
      _
    // Predicated region
    $region6: #{tpu_custom_call.1} parent=1 // pred_check
      _
    $region7: #{tpu_custom_call.1} parent=1 // pred_check_branch
      %30 = sbr.rel (0) target = $region9
    $region8: #{tpu_custom_call.1} parent=1 // pred_region
      %32 = vsyncadd [#allocation6], 0
      %s33 = sshll.u32 %s1, 4
      %s34 = int_to_ptr.hbm [resolvable:$true] %s33
      %s35 = sshll.u32 [#allocation5], 4
      %s36 = int_to_ptr.vmem [resolvable:$true] %s35
      %41 = dma.hbm_to_vmem [thread:$0]  %s34, 1024, %s36, [#allocation6], 64, 64, 4
    $region9: #{tpu_custom_call.1} parent=1 // pred_fallthru
      _
    // Predicated region
    $region10: #{tpu_custom_call.1} parent=1 // pred_check
      _
    $region11: #{tpu_custom_call.1} parent=1 // pred_check_branch
      %43 = sbr.rel (0) target = $region13
    $region12: #{tpu_custom_call.1} parent=1 // pred_region
      _
    $region13: #{tpu_custom_call.1} parent=1 // pred_fallthru
      _
    // Predicated region
    $region14: #{tpu_custom_call.1} parent=1 // pred_check
      _
    $region15: #{tpu_custom_call.1} parent=1 // pred_check_branch
      %45 = sbr.rel (0) target = $region17
    $region16: #{tpu_custom_call.1} parent=1 // pred_region
      %47 = vsyncadd [#allocation6], 0
      %s48 = sshll.u32 %s3, 4
      %s49 = int_to_ptr.hbm [resolvable:$true] %s48
      %s50 = sshll.u32 [#allocation7], 4
      %s51 = int_to_ptr.vmem [resolvable:$true] %s50
      %56 = dma.hbm_to_vmem [thread:$0]  %s49, 1024, %s51, [#allocation6], 64, 64, 4
    $region17: #{tpu_custom_call.1} parent=1 // pred_fallthru
      _
    // Predicated region
    $region18: #{tpu_custom_call.1} parent=1 // pred_check
      _
    $region19: #{tpu_custom_call.1} parent=1 // pred_check_branch
      %58 = sbr.rel (0) target = $region21
    $region20: #{tpu_custom_call.1} parent=1 // pred_region
      _
    $region21: #{tpu_custom_call.1} parent=1 // pred_fallthru
      _
    // Predicated region
    $region22: #{tpu_custom_call.1} parent=1 // pred_check
      _
    $region23: #{tpu_custom_call.1} parent=1 // pred_check_branch
      %60 = sbr.rel (0) target = $region25
    $region24: #{tpu_custom_call.1} parent=1 // pred_region
      %62 = vsyncadd [#allocation9], 0
      %s63 = sshll.u32 %s5, 4
      %s64 = int_to_ptr.hbm [resolvable:$true] %s63
      %s65 = sshll.u32 [#allocation8], 4
      %s66 = int_to_ptr.vmem [resolvable:$true] %s65
      %71 = dma.hbm_to_vmem [thread:$0]  %s64, 1024, %s66, [#allocation9], 64, 64, 4
    $region25: #{tpu_custom_call.1} parent=1 // pred_fallthru
      _
    // Predicated region
    $region26: #{tpu_custom_call.1} parent=1 // pred_check
      _
    $region27: #{tpu_custom_call.1} parent=1 // pred_check_branch
      %73 = sbr.rel (0) target = $region29
    $region28: #{tpu_custom_call.1} parent=1 // pred_region
      _
    $region29: #{tpu_custom_call.1} parent=1 // pred_fallthru
      _
    // Predicated region
    $region30: #{tpu_custom_call.1} parent=1 // pred_check
      _
    $region31: #{tpu_custom_call.1} parent=1 // pred_check_branch
      %75 = sbr.rel (0) target = $region33
    $region32: #{tpu_custom_call.1} parent=1 // pred_region
      %77 = dma.done [#allocation3], 512
    $region33: #{tpu_custom_call.1} parent=1 // pred_fallthru
      _
    // Predicated region
    $region34: #{tpu_custom_call.1} parent=1 // pred_check
      _
    $region35: #{tpu_custom_call.1} parent=1 // pred_check_branch
      %79 = sbr.rel (0) target = $region37
    $region36: #{tpu_custom_call.1} parent=1 // pred_region
      %81 = dma.done [#allocation6], 1024
    $region37: #{tpu_custom_call.1} parent=1 // pred_fallthru
      _
    // Predicated region
    $region38: #{tpu_custom_call.1} parent=1 // pred_check
      _
    $region39: #{tpu_custom_call.1} parent=1 // pred_check_branch
      %83 = sbr.rel (0) target = $region41
    $region40: #{tpu_custom_call.1} parent=1 // pred_region
      %85 = dma.done [#allocation6], 1024
    $region41: #{tpu_custom_call.1} parent=1 // pred_fallthru
      _
    // Predicated region
    $region42: #{tpu_custom_call.1} parent=1 // pred_check
      _
    $region43: #{tpu_custom_call.1} parent=1 // pred_check_branch
      %87 = sbr.rel (0) target = $region45
    $region44: #{tpu_custom_call.1} parent=1 // pred_region
      %89 = dma.done [#allocation9], 1024
    $region45: #{tpu_custom_call.1} parent=1 // pred_fallthru
      _
    %v90 = vld [vmem:[#allocation2] sm:$0xf]
    %v91 = vld [vmem:[#allocation2 + $0x4] sm:$0xf]
    %v92 = vld [vmem:[#allocation2 + $0x8] sm:$0xf]
    %v93 = vld [vmem:[#allocation2 + $0xc] sm:$0xf]
    %v94 = vld [vmem:[#allocation2 + $0x10] sm:$0xf]
    %v95 = vld [vmem:[#allocation2 + $0x14] sm:$0xf]
    %v96 = vld [vmem:[#allocation2 + $0x18] sm:$0xf]
    %v97 = vld [vmem:[#allocation2 + $0x1c] sm:$0xf]
    %v98 = vld [vmem:[#allocation5] sm:$0xf]
    %v99 = vld [vmem:[#allocation5 + $0x4] sm:$0xf]
    %v100 = vld [vmem:[#allocation5 + $0x8] sm:$0xf]
    %v101 = vld [vmem:[#allocation5 + $0xc] sm:$0xf]
    %v102 = vld [vmem:[#allocation5 + $0x10] sm:$0xf]
    %v103 = vld [vmem:[#allocation5 + $0x14] sm:$0xf]
    %v104 = vld [vmem:[#allocation5 + $0x18] sm:$0xf]
    %v105 = vld [vmem:[#allocation5 + $0x1c] sm:$0xf]
    %v106 = vld [vmem:[#allocation5 + $0x20] sm:$0xf]
    %v107 = vld [vmem:[#allocation5 + $0x24] sm:$0xf]
    %v108 = vld [vmem:[#allocation5 + $0x28] sm:$0xf]
    %v109 = vld [vmem:[#allocation5 + $0x2c] sm:$0xf]
    %v110 = vld [vmem:[#allocation5 + $0x30] sm:$0xf]
    %v111 = vld [vmem:[#allocation5 + $0x34] sm:$0xf]
    %v112 = vld [vmem:[#allocation5 + $0x38] sm:$0xf]
    %v113 = vld [vmem:[#allocation5 + $0x3c] sm:$0xf]
    %v114 = vld [vmem:[%s2] sm:$0x1]
    %v116 = vperm.slane %v114, 0
    %v126 = vunpack.c.l.b16 %v90
    %v127 = vunpack.c.l.b16 %v91
    %v128 = vunpack.c.l.b16 %v92
    %v129 = vunpack.c.l.b16 %v93
    %v130 = vunpack.c.l.b16 %v94
    %v131 = vunpack.c.l.b16 %v95
    %v132 = vunpack.c.l.b16 %v96
    %v133 = vunpack.c.l.b16 %v97
    %v134 = vpack.c.b16 %v127, %v126
    %v135 = vpack.c.b16 %v129, %v128
    %v136 = vpack.c.b16 %v131, %v130
    %v137 = vpack.c.b16 %v133, %v132
    %v158 = vunpack.c.l.b16 %v98
    %v159 = vunpack.c.l.b16 %v99
    %v160 = vunpack.c.l.b16 %v100
    %v161 = vunpack.c.l.b16 %v101
    %v162 = vunpack.c.l.b16 %v102
    %v163 = vunpack.c.l.b16 %v103
    %v164 = vunpack.c.l.b16 %v104
    %v165 = vunpack.c.l.b16 %v105
    %v166 = vunpack.c.l.b16 %v106
    %v167 = vunpack.c.l.b16 %v107
    %v168 = vunpack.c.l.b16 %v108
    %v169 = vunpack.c.l.b16 %v109
    %v170 = vunpack.c.l.b16 %v110
    %v171 = vunpack.c.l.b16 %v111
    %v172 = vunpack.c.l.b16 %v112
    %v173 = vunpack.c.l.b16 %v113
    %v174 = vpack.c.b16 %v159, %v158
    %v175 = vpack.c.b16 %v161, %v160
    %v176 = vpack.c.b16 %v163, %v162
    %v177 = vpack.c.b16 %v165, %v164
    %v178 = vpack.c.b16 %v167, %v166
    %v179 = vpack.c.b16 %v169, %v168
    %v180 = vpack.c.b16 %v171, %v170
    %v181 = vpack.c.b16 %v173, %v172
    %190 = vmatpush.bf16.msra.mxu0 %v181
    %191 = vmatpush.bf16.msra.mxu0 %v180
    %192 = vmatpush.bf16.msra.mxu0 %v179
    %193 = vmatpush.bf16.msra.mxu0 %v178
    %194 = vmatpush.bf16.msra.mxu0 %v177
    %195 = vmatpush.bf16.msra.mxu0 %v176
    %196 = vmatpush.bf16.msra.mxu0 %v175
    %197 = vmatpush.bf16.msra.mxu0 %v174
    %198 = vmatmul.bf16.gmra.mxu0 %v134
    %v199 = vpop.f32.mrf.mxu0
    %v200 = vadd.f32 %v116, %v199
    %v201 = vpop.f32.mrf.mxu0
    %v202 = vadd.f32 %v116, %v201
    %203 = vmatmul.bf16.gmra.mxu0 %v135
    %v204 = vpop.f32.mrf.mxu0
    %v205 = vadd.f32 %v116, %v204
    %v206 = vpop.f32.mrf.mxu0
    %v207 = vadd.f32 %v116, %v206
    %208 = vmatmul.bf16.gmra.mxu0 %v136
    %v209 = vpop.f32.mrf.mxu0
    %v210 = vadd.f32 %v116, %v209
    %v211 = vpop.f32.mrf.mxu0
    %v212 = vadd.f32 %v116, %v211
    %213 = vmatmul.bf16.gmra.mxu0 %v137
    %v214 = vpop.f32.mrf.mxu0
    %v215 = vadd.f32 %v116, %v214
    %v216 = vpop.f32.mrf.mxu0
    %v217 = vadd.f32 %v116, %v216
    %218 = vdwg.mxu0
    %v219 = vmax.f32 %v200, 0.0
    %v220 = vmax.f32 %v202, 0.0
    %v221 = vmax.f32 %v205, 0.0
    %v222 = vmax.f32 %v207, 0.0
    %v223 = vmax.f32 %v210, 0.0
    %v224 = vmax.f32 %v212, 0.0
    %v225 = vmax.f32 %v215, 0.0
    %v226 = vmax.f32 %v217, 0.0
    %v227 = vld [vmem:[#allocation7] sm:$0xf]
    %v228 = vld [vmem:[#allocation7 + $0x4] sm:$0xf]
    %v229 = vld [vmem:[#allocation7 + $0x8] sm:$0xf]
    %v230 = vld [vmem:[#allocation7 + $0xc] sm:$0xf]
    %v231 = vld [vmem:[#allocation7 + $0x10] sm:$0xf]
    %v232 = vld [vmem:[#allocation7 + $0x14] sm:$0xf]
    %v233 = vld [vmem:[#allocation7 + $0x18] sm:$0xf]
    %v234 = vld [vmem:[#allocation7 + $0x1c] sm:$0xf]
    %v235 = vld [vmem:[#allocation7 + $0x20] sm:$0xf]
    %v236 = vld [vmem:[#allocation7 + $0x24] sm:$0xf]
    %v237 = vld [vmem:[#allocation7 + $0x28] sm:$0xf]
    %v238 = vld [vmem:[#allocation7 + $0x2c] sm:$0xf]
    %v239 = vld [vmem:[#allocation7 + $0x30] sm:$0xf]
    %v240 = vld [vmem:[#allocation7 + $0x34] sm:$0xf]
    %v241 = vld [vmem:[#allocation7 + $0x38] sm:$0xf]
    %v242 = vld [vmem:[#allocation7 + $0x3c] sm:$0xf]
    %v243 = vld [vmem:[%s4] sm:$0x1]
    %v244 = vpack.c.bf16 %v220, %v219
    %v245 = vpack.c.bf16 %v222, %v221
    %v246 = vpack.c.bf16 %v224, %v223
    %v247 = vpack.c.bf16 %v226, %v225
    %v249 = vperm.slane %v243, 0
    %v267 = vunpack.c.l.b16 %v227
    %v268 = vunpack.c.l.b16 %v228
    %v269 = vunpack.c.l.b16 %v229
    %v270 = vunpack.c.l.b16 %v230
    %v271 = vunpack.c.l.b16 %v231
    %v272 = vunpack.c.l.b16 %v232
    %v273 = vunpack.c.l.b16 %v233
    %v274 = vunpack.c.l.b16 %v234
    %v275 = vunpack.c.l.b16 %v235
    %v276 = vunpack.c.l.b16 %v236
    %v277 = vunpack.c.l.b16 %v237
    %v278 = vunpack.c.l.b16 %v238
    %v279 = vunpack.c.l.b16 %v239
    %v280 = vunpack.c.l.b16 %v240
    %v281 = vunpack.c.l.b16 %v241
    %v282 = vunpack.c.l.b16 %v242
    %v283 = vpack.c.b16 %v268, %v267
    %v284 = vpack.c.b16 %v270, %v269
    %v285 = vpack.c.b16 %v272, %v271
    %v286 = vpack.c.b16 %v274, %v273
    %v287 = vpack.c.b16 %v276, %v275
    %v288 = vpack.c.b16 %v278, %v277
    %v289 = vpack.c.b16 %v280, %v279
    %v290 = vpack.c.b16 %v282, %v281
    %299 = vmatpush.bf16.msra.mxu0 %v290
    %300 = vmatpush.bf16.msra.mxu0 %v289
    %301 = vmatpush.bf16.msra.mxu0 %v288
    %302 = vmatpush.bf16.msra.mxu0 %v287
    %303 = vmatpush.bf16.msra.mxu0 %v286
    %304 = vmatpush.bf16.msra.mxu0 %v285
    %305 = vmatpush.bf16.msra.mxu0 %v284
    %306 = vmatpush.bf16.msra.mxu0 %v283
    %307 = vmatmul.bf16.gmra.mxu0 %v244
    %v308 = vpop.f32.mrf.mxu0
    %v309 = vadd.f32 %v249, %v308
    %v310 = vpop.f32.mrf.mxu0
    %v311 = vadd.f32 %v249, %v310
    %312 = vmatmul.bf16.gmra.mxu0 %v245
    %v313 = vpop.f32.mrf.mxu0
    %v314 = vadd.f32 %v249, %v313
    %v315 = vpop.f32.mrf.mxu0
    %v316 = vadd.f32 %v249, %v315
    %317 = vmatmul.bf16.gmra.mxu0 %v246
    %v318 = vpop.f32.mrf.mxu0
    %v319 = vadd.f32 %v249, %v318
    %v320 = vpop.f32.mrf.mxu0
    %v321 = vadd.f32 %v249, %v320
    %322 = vmatmul.bf16.gmra.mxu0 %v247
    %v323 = vpop.f32.mrf.mxu0
    %v324 = vadd.f32 %v249, %v323
    %v325 = vpop.f32.mrf.mxu0
    %v326 = vadd.f32 %v249, %v325
    %327 = vdwg.mxu0
    %v328 = vmax.f32 %v309, 0.0
    %v329 = vmax.f32 %v311, 0.0
    %v330 = vmax.f32 %v314, 0.0
    %v331 = vmax.f32 %v316, 0.0
    %v332 = vmax.f32 %v319, 0.0
    %v333 = vmax.f32 %v321, 0.0
    %v334 = vmax.f32 %v324, 0.0
    %v335 = vmax.f32 %v326, 0.0
    %v336 = vpack.c.bf16 %v329, %v328
    %v337 = vpack.c.bf16 %v331, %v330
    %v338 = vpack.c.bf16 %v333, %v332
    %v339 = vpack.c.bf16 %v335, %v334
    %v340 = vld [vmem:[#allocation8] sm:$0xf]
    %v341 = vld [vmem:[#allocation8 + $0x4] sm:$0xf]
    %v342 = vld [vmem:[#allocation8 + $0x8] sm:$0xf]
    %v343 = vld [vmem:[#allocation8 + $0xc] sm:$0xf]
    %v344 = vld [vmem:[#allocation8 + $0x10] sm:$0xf]
    %v345 = vld [vmem:[#allocation8 + $0x14] sm:$0xf]
    %v346 = vld [vmem:[#allocation8 + $0x18] sm:$0xf]
    %v347 = vld [vmem:[#allocation8 + $0x1c] sm:$0xf]
    %v348 = vld [vmem:[#allocation8 + $0x20] sm:$0xf]
    %v349 = vld [vmem:[#allocation8 + $0x24] sm:$0xf]
    %v350 = vld [vmem:[#allocation8 + $0x28] sm:$0xf]
    %v351 = vld [vmem:[#allocation8 + $0x2c] sm:$0xf]
    %v352 = vld [vmem:[#allocation8 + $0x30] sm:$0xf]
    %v353 = vld [vmem:[#allocation8 + $0x34] sm:$0xf]
    %v354 = vld [vmem:[#allocation8 + $0x38] sm:$0xf]
    %v355 = vld [vmem:[#allocation8 + $0x3c] sm:$0xf]
    %v356 = vld [vmem:[%s6] sm:$0x1]
    %v358 = vperm.slane %v356, 0
    %v376 = vunpack.c.l.b16 %v340
    %v377 = vunpack.c.l.b16 %v341
    %v378 = vunpack.c.l.b16 %v342
    %v379 = vunpack.c.l.b16 %v343
    %v380 = vunpack.c.l.b16 %v344
    %v381 = vunpack.c.l.b16 %v345
    %v382 = vunpack.c.l.b16 %v346
    %v383 = vunpack.c.l.b16 %v347
    %v384 = vunpack.c.l.b16 %v348
    %v385 = vunpack.c.l.b16 %v349
    %v386 = vunpack.c.l.b16 %v350
    %v387 = vunpack.c.l.b16 %v351
    %v388 = vunpack.c.l.b16 %v352
    %v389 = vunpack.c.l.b16 %v353
    %v390 = vunpack.c.l.b16 %v354
    %v391 = vunpack.c.l.b16 %v355
    %v392 = vpack.c.b16 %v377, %v376
    %v393 = vpack.c.b16 %v379, %v378
    %v394 = vpack.c.b16 %v381, %v380
    %v395 = vpack.c.b16 %v383, %v382
    %v396 = vpack.c.b16 %v385, %v384
    %v397 = vpack.c.b16 %v387, %v386
    %v398 = vpack.c.b16 %v389, %v388
    %v399 = vpack.c.b16 %v391, %v390
    %408 = vmatpush.bf16.msra.mxu0 %v399
    %409 = vmatpush.bf16.msra.mxu0 %v398
    %410 = vmatpush.bf16.msra.mxu0 %v397
    %411 = vmatpush.bf16.msra.mxu0 %v396
    %412 = vmatpush.bf16.msra.mxu0 %v395
    %413 = vmatpush.bf16.msra.mxu0 %v394
    %414 = vmatpush.bf16.msra.mxu0 %v393
    %415 = vmatpush.bf16.msra.mxu0 %v392
    %416 = vmatmul.bf16.gmra.mxu0 %v336
    %v417 = vpop.f32.mrf.mxu0
    %v418 = vadd.f32 %v358, %v417
    %v419 = vpop.f32.mrf.mxu0
    %v420 = vadd.f32 %v358, %v419
    %421 = vmatmul.bf16.gmra.mxu0 %v337
    %v422 = vpop.f32.mrf.mxu0
    %v423 = vadd.f32 %v358, %v422
    %v424 = vpop.f32.mrf.mxu0
    %v425 = vadd.f32 %v358, %v424
    %426 = vmatmul.bf16.gmra.mxu0 %v338
    %v427 = vpop.f32.mrf.mxu0
    %v428 = vadd.f32 %v358, %v427
    %v429 = vpop.f32.mrf.mxu0
    %v430 = vadd.f32 %v358, %v429
    %431 = vmatmul.bf16.gmra.mxu0 %v339
    %v432 = vpop.f32.mrf.mxu0
    %v433 = vadd.f32 %v358, %v432
    %v434 = vpop.f32.mrf.mxu0
    %v435 = vadd.f32 %v358, %v434
    %436 = vdwg.mxu0
    %437 = vxpose.xlu0.b32.start [1/16] %v418, 128
    %438 = vxpose.xlu0.b32.cont [2/16] %v420, 128
    %439 = vxpose.xlu0.b32.cont [3/16] %v423, 128
    %440 = vxpose.xlu0.b32.cont [4/16] %v425, 128
    %441 = vxpose.xlu0.b32.cont [5/16] %v428, 128
    %442 = vxpose.xlu0.b32.cont [6/16] %v430, 128
    %443 = vxpose.xlu0.b32.cont [7/16] %v433, 128
    %444 = vxpose.xlu0.b32.cont [8/16] %v435, 128
    %445 = vxpose.xlu0.b32.cont [9/16] 0.0, 128
    %446 = vxpose.xlu0.b32.cont [10/16] 0.0, 128
    %447 = vxpose.xlu0.b32.cont [11/16] 0.0, 128
    %448 = vxpose.xlu0.b32.cont [12/16] 0.0, 128
    %449 = vxpose.xlu0.b32.cont [13/16] 0.0, 128
    %450 = vxpose.xlu0.b32.cont [14/16] 0.0, 128
    %451 = vxpose.xlu0.b32.cont [15/16] 0.0, 128
    %452 = vxpose.xlu0.b32.end [16/16] 0.0, 128
    %v453 = vpop.trf.xlu0
    %v454 = vpop.trf.xlu0
    %v455 = vpop.trf.xlu0
    %v456 = vpop.trf.xlu0
    %v457 = vpop.trf.xlu0
    %v458 = vpop.trf.xlu0
    %v459 = vpop.trf.xlu0
    %v460 = vpop.trf.xlu0
    %v461 = vpop.trf.xlu0
    %v462 = vpop.trf.xlu0
    %v463 = vpop.trf.xlu0
    %v464 = vpop.trf.xlu0
    %v465 = vpop.trf.xlu0
    %v466 = vpop.trf.xlu0
    %v467 = vpop.trf.xlu0
    %v468 = vpop.trf.xlu0
    %vm469 = vcmask 516096
    %470 = vst.msk [vmem:[#allocation10] sm:$0x1] %vm469, %v453
    // Predicated region
    $region46: #{tpu_custom_call.1} parent=1 // pred_check
      _
    $region47: #{tpu_custom_call.1} parent=1 // pred_check_branch
      %472 = sbr.rel (0) target = $region49
    $region48: #{tpu_custom_call.1} parent=1 // pred_region
      %474 = vsyncadd [#allocation4], 0
      %s476 = sshll.u32 [#allocation10], 4
      %s477 = int_to_ptr.vmem [resolvable:$true] %s476
      %s478 = sshll.u32 %s7, 4
      %s479 = int_to_ptr.hbm [resolvable:$true] %s478
      %481 = dma.vmem_to_hbm [thread:$0]  %s477, 16, %s479, [#allocation4]
    $region49: #{tpu_custom_call.1} parent=1 // pred_fallthru
      _
    // Predicated region
    $region50: #{tpu_custom_call.1} parent=1 // pred_check
      _
    $region51: #{tpu_custom_call.1} parent=1 // pred_check_branch
      %483 = sbr.rel (0) target = $region53
    $region52: #{tpu_custom_call.1} parent=1 // pred_region
      %485 = dma.done [#allocation4], 16
    $region53: #{tpu_custom_call.1} parent=1 // pred_fallthru
      _
    %486 = vsyncpa [#allocation3], 1
    %487 = vsyncpa [#allocation6], 1
    %488 = vsyncpa [#allocation9], 1
    %489 = vsyncpa [#allocation4], 1

</llo_original>
